<compile_context>
chip_gen: v7x
topology: tpu7x:2x2x1
jax: 0.10.0
libtpu: 0.0.40
codegen_flags: <defaults>
</compile_context>

<pallas_src>
import jax
import jax.numpy as jnp
from jax import lax
from jax.experimental import pallas as pl
from jax.experimental.pallas import tpu as pltpu

block_size = 8   # max sequence length (T)
n_embed = 32     # C
head_size = 16   # H


# ---------------------------------------------------------------------------
# Kernel
# ---------------------------------------------------------------------------
def head_kernel(x_ref, w_ref, o_ref):
    # x_ref block: (BB, T, C); w_ref: (C, 3H); o_ref block: (BB, T*H)
    BB, T, C = x_ref.shape
    H3 = w_ref.shape[1]
    H = H3 // 3

    x = x_ref[...].reshape(BB * T, C)                            # leading-dim merge (layout no-op)
    w = w_ref[...]                                               # (C, 3H), q columns pre-scaled

    # Fused k/q/v projection: one MXU matmul instead of three.
    kqv = jnp.dot(x, w, preferred_element_type=jnp.float32)      # (BB*T, 3H)
    kqv = kqv.reshape(BB, T, H3)
    k = kqv[:, :, 0 * H:1 * H]                                   # (BB, T, H)
    q = kqv[:, :, 1 * H:2 * H]                                   # scale already folded into w
    v = kqv[:, :, 2 * H:3 * H]

    # Attention scores (batched contraction over the head dim -> no explicit
    # k transpose). Scale was folded into the q projection columns.
    wei = jnp.einsum('btd,bsd->bts', q, k,
                     preferred_element_type=jnp.float32)         # (BB, T, T)

    # Causal mask (keep col <= row). Large finite fill so a fully-masked row
    # could never produce NaN (diagonal is always kept here).
    row = lax.broadcasted_iota(jnp.int32, (T, T), 0)
    col = lax.broadcasted_iota(jnp.int32, (T, T), 1)
    wei = jnp.where(col <= row, wei, jnp.float32(-1e30))

    # Numerically-stable softmax; reciprocal goes to the otherwise-idle EUP.
    wei = wei - jnp.max(wei, axis=-1, keepdims=True)
    p = jnp.exp(wei)
    p = p * pl.reciprocal(jnp.sum(p, axis=-1, keepdims=True), approx=False)

    out = jnp.einsum('bts,bsd->btd', p, v,
                     preferred_element_type=jnp.float32)          # (BB, T, H)

    # Lane-dense output block (BB, T*H = 128): dense VMEM buffer + dense HBM
    # DMA. Each timestep goes into its static 16-lane slot.
    # TODO(synk): pack the (BB, T, H) value into a single (BB, 128) vreg row
    # in-register (full-width vst) once the sublane->lane shape cast is
    # verified to lower at this shape; also pack batch into lanes for the
    # score/softmax region (currently 8-16/128 lane utilization on VPU/XLU).
    for t in range(T):
        o_ref[:, t * H:(t + 1) * H] = out[:, t, :].astype(o_ref.dtype)


# ---------------------------------------------------------------------------
# Generation-aware block sizing / VMEM budgeting
# ---------------------------------------------------------------------------
# Conservative f32 VMEM footprint per batch element inside one grid step:
# double-buffered x block (8x128-padded), double-buffered 128-lane out block,
# plus VMEM-backed intermediates (kqv, k/q/v, wei/p, out), all lane-padded.
_PER_ELEM_VMEM_BYTES = 48 * 1024

# Upper cap on the batch block. Big blocks amortize the ~0.35us per-grid-step
# overhead; the cap keeps the VMEM footprint and the (possibly per-batch
# unrolled) batched-einsum lowering bounded. Re-tune with a bundle dump.
_MAX_BATCH_BLOCK = 512


def _tpu_generation():
    """Return (num_tensorcores_per_device, vmem_limit_bytes)."""
    kind = ""
    try:
        kind = jax.devices()[0].device_kind.lower()
    except Exception:
        pass
    if "v2" in kind or "v3" in kind:
        return 1, 12 * 1024 * 1024          # tiny VMEM generations
    if "7" in kind:
        return 2, 40 * 1024 * 1024          # v7x: 2 TCs, only 64 MiB physical VMEM
    if "v4" in kind or ("v5" in kind and "lite" not in kind and "5e" not in kind):
        return 2, 64 * 1024 * 1024          # v4 / v5p megacore, 128 MiB VMEM
    # v5e / v6e / unknown: 1 TC, 128 MiB physical VMEM. Explicit limit raises
    # v5e's 16 MiB (and v6e's 32 MiB) default scoped limit.
    return 1, 64 * 1024 * 1024


def _pick_batch_block(B, num_cores, vmem_limit_bytes):
    """Largest batch-block within the VMEM budget.

    Megacore chips get exactly `num_cores` maximal blocks (both TCs fed via
    the 'parallel' axis); single-TC chips get one maximal block. Blocks must
    divide B and (if < B) be a multiple of 8 so the (bb, 128) output block
    satisfies the (8, 128) tiling constraint.
    """
    budget = max(vmem_limit_bytes - (8 << 20), 1 << 20)   # leave headroom
    cap = max(1, min(_MAX_BATCH_BLOCK, budget // _PER_ELEM_VMEM_BYTES))

    def ok(bb):
        return bb >= 1 and B % bb == 0 and (bb == B or bb % 8 == 0)

    if num_cores > 1 and B % num_cores == 0:
        bb = B // num_cores
        if bb <= cap and ok(bb):
            return bb
    if B <= cap:
        return B                      # single grid step: zero extra overhead
    for bb in range(min(cap, B), 0, -1):
        if ok(bb):
            return bb
    return 1


# ---------------------------------------------------------------------------
# Wrapper
# ---------------------------------------------------------------------------
def make_fused_qkv_weight(wk, wq, wv):
    """One-time weight prep: [k | q * C**-0.5 | v] -> (C, 3H).

    Folding the score scale into the q columns removes a (bb, T, T) VPU
    multiply per grid step; fusing removes two extra weight matmuls/DMAs.
    """
    C = wk.shape[0]
    scale = jnp.float32(C) ** -0.5
    return jnp.concatenate([wk, wq * scale, wv], axis=1)


def head_forward(x, w_kqv):
    B, T, C = x.shape
    H3 = w_kqv.shape[1]
    H = H3 // 3

    num_cores, vmem_limit = _tpu_generation()
    bb = _pick_batch_block(B, num_cores, vmem_limit)
    grid = (B // bb,)

    out_flat = pl.pallas_call(
        head_kernel,
        out_shape=jax.ShapeDtypeStruct((B, T * H), x.dtype),
        grid_spec=pltpu.PrefetchScalarGridSpec(
            num_scalar_prefetch=0,
            grid=grid,
            in_specs=[
                pl.BlockSpec((bb, T, C), lambda b: (b, 0, 0)),
                pl.BlockSpec((C, H3), lambda b: (0, 0)),   # VMEM-resident weights
            ],
            out_specs=pl.BlockSpec((bb, T * H), lambda b: (b, 0)),
        ),
        compiler_params=pltpu.CompilerParams(
            dimension_semantics=("parallel",),
            vmem_limit_bytes=vmem_limit,
        ),
    )(x, w_kqv)
    return out_flat.reshape(B, T, H)


def head_reference(x, wk, wq, wv):
    """Plain-JAX reference mirroring the PyTorch forward."""
    B, T, C = x.shape
    k = x @ wk
    q = x @ wq
    v = x @ wv
    wei = (q @ jnp.swapaxes(k, -2, -1)) * (C ** -0.5)
    tril = jnp.tril(jnp.ones((T, T)))
    wei = jnp.where(tril == 0, -jnp.inf, wei)
    wei = jax.nn.softmax(wei, axis=-1)
    return wei @ v


if __name__ == "__main__":
    key = jax.random.PRNGKey(0)
    kx, kk, kq, kv = jax.random.split(key, 4)

    B, T, C, H = 2, block_size, n_embed, head_size

    x = jax.random.normal(kx, (B, T, C), dtype=jnp.float32)
    # nn.Linear(n_embed, head_size) weight ~ U(-1/sqrt(C), 1/sqrt(C)); stored pre-transposed (C, H)
    bound = 1.0 / (C ** 0.5)
    wk = jax.random.uniform(kk, (C, H), jnp.float32, -bound, bound)
    wq = jax.random.uniform(kq, (C, H), jnp.float32, -bound, bound)
    wv = jax.random.uniform(kv, (C, H), jnp.float32, -bound, bound)

    # One-time fused / pre-scaled weight (cache this across forward calls).
    w_kqv = make_fused_qkv_weight(wk, wq, wv)

    out = head_forward(x, w_kqv)
    out = jax.block_until_ready(out)

    with jax.default_matmul_precision("float32"):
        ref = head_reference(x, wk, wq, wv)
    ref = jax.block_until_ready(ref)

    assert out.shape == (B, T, H)
    assert jnp.allclose(out, ref, atol=2e-3, rtol=2e-3), "mismatch vs reference"

    print("KERNEL_OK")
</pallas_src>

<mosaic_0001>
module attributes {stable_mosaic.version = 11 : i64} {
  func.func @head_kernel(%arg0: i32, %arg1: memref<2x8x32xf32, #tpu.memory_space<vmem>>, %arg2: memref<32x48xf32, #tpu.memory_space<vmem>>, %arg3: memref<2x128xf32, #tpu.memory_space<vmem>>) attributes {dimension_semantics = [#tpu.dimension_semantics<parallel>], iteration_bounds = array<i64: 1>, scalar_prefetch = 0 : i64, scratch_operands = 0 : i64, tpu.core_type = #tpu.core_type<tc>, window_params = [{transform_indices = @transform_0, window_bounds = array<i64: 2, 8, 32>}, {pipeline_mode = #tpu.pipeline_mode<synchronous>, transform_indices = @transform_1, window_bounds = array<i64: 32, 48>}, {transform_indices = @transform_2, window_bounds = array<i64: 2, 128>}]} {
    %c0 = arith.constant 0 : index
    %c0_0 = arith.constant 0 : index
    %c0_1 = arith.constant 0 : index
    %0 = vector.load %arg1[%c0, %c0_0, %c0_1] : memref<2x8x32xf32, #tpu.memory_space<vmem>>, vector<2x8x32xf32>
    %1 = vector.shape_cast %0 : vector<2x8x32xf32> to vector<16x32xf32>
    %c0_2 = arith.constant 0 : index
    %c0_3 = arith.constant 0 : index
    %2 = vector.load %arg2[%c0_2, %c0_3] : memref<32x48xf32, #tpu.memory_space<vmem>>, vector<32x48xf32>
    %cst = arith.constant dense<0.000000e+00> : vector<16x48xf32>
    %3 = tpu.matmul %1, %2, %cst {dimension_numbers = #tpu.dot_dimension_numbers<[1], [0], [0], [1], [0, 0, 1, 1], [], []>} : vector<16x32xf32>, vector<32x48xf32>, vector<16x48xf32> -> vector<16x48xf32>
    %4 = vector.shape_cast %3 : vector<16x48xf32> to vector<2x8x48xf32>
    %5 = vector.extract_strided_slice %4 {offsets = [0, 0, 0], sizes = [2, 8, 16], strides = [1, 1, 1]} : vector<2x8x48xf32> to vector<2x8x16xf32>
    %6 = vector.extract_strided_slice %4 {offsets = [0, 0, 16], sizes = [2, 8, 16], strides = [1, 1, 1]} : vector<2x8x48xf32> to vector<2x8x16xf32>
    %7 = vector.extract_strided_slice %4 {offsets = [0, 0, 32], sizes = [2, 8, 16], strides = [1, 1, 1]} : vector<2x8x48xf32> to vector<2x8x16xf32>
    "tpu.trace_start"() <{level = 10 : i32, message = "btd,bsd->bts"}> : () -> ()
    %cst_4 = arith.constant dense<0.000000e+00> : vector<2x8x8xf32>
    %8 = tpu.matmul %6, %5, %cst_4 {dimension_numbers = #tpu.dot_dimension_numbers<[2], [2], [1], [1], [0, 0, 0, 1, 1, 1], [0], [0]>} : vector<2x8x16xf32>, vector<2x8x16xf32>, vector<2x8x8xf32> -> vector<2x8x8xf32>
    "tpu.trace_stop"() : () -> ()
    %9 = tpu.iota {dimensions = array<i32: 0>} : vector<8x8xi32>
    %10 = tpu.iota {dimensions = array<i32: 1>} : vector<8x8xi32>
    %11 = arith.cmpi sle, %10, %9 : vector<8x8xi32>
    %cst_5 = arith.constant -1.000000e+30 : f32
    %12 = vector.shape_cast %11 : vector<8x8xi1> to vector<1x8x8xi1>
    %13 = vector.broadcast %12 : vector<1x8x8xi1> to vector<2x8x8xi1>
    %14 = vector.broadcast %cst_5 : f32 to vector<2x8x8xf32>
    %15 = arith.select %13, %8, %14 : vector<2x8x8xi1>, vector<2x8x8xf32>
    %cst_6 = arith.constant dense<0xFF800000> : vector<2x8xf32>
    %16 = vector.multi_reduction <maximumf>, %15, %cst_6 [2] : vector<2x8x8xf32> to vector<2x8xf32>
    %17 = vector.shape_cast %16 : vector<2x8xf32> to vector<2x8x1xf32>
    %18 = vector.broadcast %17 : vector<2x8x1xf32> to vector<2x8x8xf32>
    %19 = arith.subf %15, %18 : vector<2x8x8xf32>
    %20 = math.exp %19 : vector<2x8x8xf32>
    %cst_7 = arith.constant dense<0.000000e+00> : vector<2x8xf32>
    %21 = vector.multi_reduction <add>, %20, %cst_7 [2] : vector<2x8x8xf32> to vector<2x8xf32>
    %22 = vector.shape_cast %21 : vector<2x8xf32> to vector<2x8x1xf32>
    %23 = tpu.reciprocal %22 : vector<2x8x1xf32> -> vector<2x8x1xf32>
    %24 = vector.broadcast %23 : vector<2x8x1xf32> to vector<2x8x8xf32>
    %25 = arith.mulf %20, %24 : vector<2x8x8xf32>
    "tpu.trace_start"() <{level = 10 : i32, message = "bts,bsd->btd"}> : () -> ()
    %cst_8 = arith.constant dense<0.000000e+00> : vector<2x8x16xf32>
    %26 = tpu.matmul %25, %7, %cst_8 {dimension_numbers = #tpu.dot_dimension_numbers<[2], [1], [1], [2], [0, 0, 0, 1, 1, 2], [0], [0]>} : vector<2x8x8xf32>, vector<2x8x16xf32>, vector<2x8x16xf32> -> vector<2x8x16xf32>
    "tpu.trace_stop"() : () -> ()
    %27 = vector.extract_strided_slice %26 {offsets = [0, 0, 0], sizes = [2, 1, 16], strides = [1, 1, 1]} : vector<2x8x16xf32> to vector<2x1x16xf32>
    %28 = vector.shape_cast %27 : vector<2x1x16xf32> to vector<2x16xf32>
    %c0_9 = arith.constant 0 : index
    %c0_10 = arith.constant 0 : index
    %29 = vector.load %arg3[%c0_9, %c0_10] : memref<2x128xf32, #tpu.memory_space<vmem>>, vector<2x16xf32>
    tpu.vector_store %arg3[%c0_9, %c0_10], %28 {strides = array<i32>} : memref<2x128xf32, #tpu.memory_space<vmem>>, vector<2x16xf32>,
    %30 = vector.extract_strided_slice %26 {offsets = [0, 1, 0], sizes = [2, 1, 16], strides = [1, 1, 1]} : vector<2x8x16xf32> to vector<2x1x16xf32>
    %31 = vector.shape_cast %30 : vector<2x1x16xf32> to vector<2x16xf32>
    %c0_11 = arith.constant 0 : index
    %c16 = arith.constant 16 : index
    %32 = vector.load %arg3[%c0_11, %c16] : memref<2x128xf32, #tpu.memory_space<vmem>>, vector<2x16xf32>
    tpu.vector_store %arg3[%c0_11, %c16], %31 {strides = array<i32>} : memref<2x128xf32, #tpu.memory_space<vmem>>, vector<2x16xf32>,
    %33 = vector.extract_strided_slice %26 {offsets = [0, 2, 0], sizes = [2, 1, 16], strides = [1, 1, 1]} : vector<2x8x16xf32> to vector<2x1x16xf32>
    %34 = vector.shape_cast %33 : vector<2x1x16xf32> to vector<2x16xf32>
    %c0_12 = arith.constant 0 : index
    %c32 = arith.constant 32 : index
    %35 = vector.load %arg3[%c0_12, %c32] : memref<2x128xf32, #tpu.memory_space<vmem>>, vector<2x16xf32>
    tpu.vector_store %arg3[%c0_12, %c32], %34 {strides = array<i32>} : memref<2x128xf32, #tpu.memory_space<vmem>>, vector<2x16xf32>,
    %36 = vector.extract_strided_slice %26 {offsets = [0, 3, 0], sizes = [2, 1, 16], strides = [1, 1, 1]} : vector<2x8x16xf32> to vector<2x1x16xf32>
    %37 = vector.shape_cast %36 : vector<2x1x16xf32> to vector<2x16xf32>
    %c0_13 = arith.constant 0 : index
    %c48 = arith.constant 48 : index
    %38 = vector.load %arg3[%c0_13, %c48] : memref<2x128xf32, #tpu.memory_space<vmem>>, vector<2x16xf32>
    tpu.vector_store %arg3[%c0_13, %c48], %37 {strides = array<i32>} : memref<2x128xf32, #tpu.memory_space<vmem>>, vector<2x16xf32>,
    %39 = vector.extract_strided_slice %26 {offsets = [0, 4, 0], sizes = [2, 1, 16], strides = [1, 1, 1]} : vector<2x8x16xf32> to vector<2x1x16xf32>
    %40 = vector.shape_cast %39 : vector<2x1x16xf32> to vector<2x16xf32>
    %c0_14 = arith.constant 0 : index
    %c64 = arith.constant 64 : index
    %41 = vector.load %arg3[%c0_14, %c64] : memref<2x128xf32, #tpu.memory_space<vmem>>, vector<2x16xf32>
    tpu.vector_store %arg3[%c0_14, %c64], %40 {strides = array<i32>} : memref<2x128xf32, #tpu.memory_space<vmem>>, vector<2x16xf32>,
    %42 = vector.extract_strided_slice %26 {offsets = [0, 5, 0], sizes = [2, 1, 16], strides = [1, 1, 1]} : vector<2x8x16xf32> to vector<2x1x16xf32>
    %43 = vector.shape_cast %42 : vector<2x1x16xf32> to vector<2x16xf32>
    %c0_15 = arith.constant 0 : index
    %c80 = arith.constant 80 : index
    %44 = vector.load %arg3[%c0_15, %c80] : memref<2x128xf32, #tpu.memory_space<vmem>>, vector<2x16xf32>
    tpu.vector_store %arg3[%c0_15, %c80], %43 {strides = array<i32>} : memref<2x128xf32, #tpu.memory_space<vmem>>, vector<2x16xf32>,
    %45 = vector.extract_strided_slice %26 {offsets = [0, 6, 0], sizes = [2, 1, 16], strides = [1, 1, 1]} : vector<2x8x16xf32> to vector<2x1x16xf32>
    %46 = vector.shape_cast %45 : vector<2x1x16xf32> to vector<2x16xf32>
    %c0_16 = arith.constant 0 : index
    %c96 = arith.constant 96 : index
    %47 = vector.load %arg3[%c0_16, %c96] : memref<2x128xf32, #tpu.memory_space<vmem>>, vector<2x16xf32>
    tpu.vector_store %arg3[%c0_16, %c96], %46 {strides = array<i32>} : memref<2x128xf32, #tpu.memory_space<vmem>>, vector<2x16xf32>,
    %48 = vector.extract_strided_slice %26 {offsets = [0, 7, 0], sizes = [2, 1, 16], strides = [1, 1, 1]} : vector<2x8x16xf32> to vector<2x1x16xf32>
    %49 = vector.shape_cast %48 : vector<2x1x16xf32> to vector<2x16xf32>
    %c0_17 = arith.constant 0 : index
    %c112 = arith.constant 112 : index
    %50 = vector.load %arg3[%c0_17, %c112] : memref<2x128xf32, #tpu.memory_space<vmem>>, vector<2x16xf32>
    tpu.vector_store %arg3[%c0_17, %c112], %49 {strides = array<i32>} : memref<2x128xf32, #tpu.memory_space<vmem>>, vector<2x16xf32>,
    return
  }
  func.func @transform_0(%arg0: i32) -> (i32, i32, i32) {
    %c0_i32 = arith.constant 0 : i32
    %c0_i32_0 = arith.constant 0 : i32
    %c0_i32_1 = arith.constant 0 : i32
    return %arg0, %c0_i32, %c0_i32_0 : i32, i32, i32
  }
  func.func @transform_1(%arg0: i32) -> (i32, i32) {
    %c0_i32 = arith.constant 0 : i32
    %c0_i32_0 = arith.constant 0 : i32
    %c0_i32_1 = arith.constant 0 : i32
    return %c0_i32, %c0_i32_0 : i32, i32
  }
  func.func @transform_2(%arg0: i32) -> (i32, i32) {
    %c0_i32 = arith.constant 0 : i32
    %c0_i32_0 = arith.constant 0 : i32
    return %arg0, %c0_i32 : i32, i32
  }
}

</mosaic_0001>

<llo_original>
// kernel: tpu_custom_call.1
$region0: #{tpu_custom_call.1}
  #allocation0 [shape = 'u32[]', space=smem, size = 0x4, offset = 0x4, fixed_abs, tag = 'smem constant byte address 0x4 - core index']
  #allocation1 [shape = 'u32[144,128]{1,0:T(1,128)}', space=vmem, size = 0x12000, scoped, tag = 'internal scratch']
  %s0 = inlined_call_operand.hbm [shape: f32[2,8,32], index: 0, kind: input, shape index: {}]
  %s1 = inlined_call_operand.hbm [shape: f32[32,48], index: 1, kind: input, shape index: {}]
  %s2 = inlined_call_operand.hbm [shape: f32[2,128], index: 2, kind: output, shape index: {}]
  %s3 = sld [smem:[#allocation0]]
  $region26: #{tpu_custom_call.1} parent=0
    _
  %s5 = ssub.s32 1, %s3
  %s6 = scalar_select 0, %s5, %s3
  $region1: #{tpu_custom_call.1} parent=0
    #allocation2 [shape = 'u8[8192]{0}', space=vmem, size = 0x2000, scoped, tag = 'input window, operand 0, single buffered']
    #allocation3 [shape = 's32[1]{0}', space=sflag, size = 0x4, scoped, tag = 'scoped memory for tpu_custom_call.1']
    #allocation4 [shape = 's32[1]{0}', space=sflag, size = 0x4, scoped, tag = 'scoped memory for tpu_custom_call.1']
    #allocation5 [shape = 'u8[16384]{0}', space=vmem, size = 0x4000, scoped, tag = 'input window, operand 1, single buffered']
    #allocation6 [shape = 's32[1]{0}', space=sflag, size = 0x4, scoped, tag = 'scoped memory for tpu_custom_call.1']
    #allocation7 [shape = 'u8[1024]{0}', space=vmem, size = 0x400, scoped, tag = 'output window, operand 0, single buffered']
    %7 = vsyncpa [#allocation3], 0
    %8 = vsyncpa [#allocation6], 0
    %9 = vsyncpa [#allocation4], 0
    // Predicated region
    $region2: #{tpu_custom_call.1} parent=1 // pred_check
      _
    $region3: #{tpu_custom_call.1} parent=1 // pred_check_branch
      %11 = sbr.rel (0) target = $region5
    $region4: #{tpu_custom_call.1} parent=1 // pred_region
      %s13 = ssub.s32 256, 256
      %14 = vsyncadd [#allocation3], %s13
      %s15 = sshll.u32 [#allocation2], 4
      %s16 = int_to_ptr.vmem [resolvable:$true] %s15
      %21 = dma.hbm_to_vmem [thread:$0]  %s0, 256, %s16, [#allocation3], 128, 128, 8
    $region5: #{tpu_custom_call.1} parent=1 // pred_fallthru
      _
    // Predicated region
    $region6: #{tpu_custom_call.1} parent=1 // pred_check
      _
    $region7: #{tpu_custom_call.1} parent=1 // pred_check_branch
      %23 = sbr.rel (0) target = $region9
    $region8: #{tpu_custom_call.1} parent=1 // pred_region
      %s25 = ssub.s32 512, 512
      %26 = vsyncadd [#allocation6], %s25
      %s27 = sshll.u32 [#allocation5], 4
      %s28 = int_to_ptr.vmem [resolvable:$true] %s27
      %33 = dma.hbm_to_vmem [thread:$0]  %s1, 512, %s28, [#allocation6], 128, 128, 8
    $region9: #{tpu_custom_call.1} parent=1 // pred_fallthru
      _
    // Predicated region
    $region10: #{tpu_custom_call.1} parent=1 // pred_check
      _
    $region11: #{tpu_custom_call.1} parent=1 // pred_check_branch
      %35 = sbr.rel (0) target = $region13
    $region12: #{tpu_custom_call.1} parent=1 // pred_region
      %36 = dma.done [#allocation3], 256
    $region13: #{tpu_custom_call.1} parent=1 // pred_fallthru
      _
    // Predicated region
    $region14: #{tpu_custom_call.1} parent=1 // pred_check
      _
    $region15: #{tpu_custom_call.1} parent=1 // pred_check_branch
      %38 = sbr.rel (0) target = $region17
    $region16: #{tpu_custom_call.1} parent=1 // pred_region
      %39 = dma.done [#allocation6], 512
    $region17: #{tpu_custom_call.1} parent=1 // pred_fallthru
      _
    %v40 = vld [vmem:[#allocation2] sm:$0xff]
    %v41 = vld [vmem:[#allocation2 + $0x8] sm:$0xff]
    %v42 = vld [vmem:[#allocation5] sm:$0xff]
    %v43 = vld [vmem:[#allocation5 + $0x8] sm:$0xff]
    %v44 = vld [vmem:[#allocation5 + $0x10] sm:$0xff]
    %v45 = vld [vmem:[#allocation5 + $0x18] sm:$0xff]
    %vm46 = vcmask 261120
    %v48 = vsel %vm46, %v40, 0
    %v51 = vsel %vm46, %v41, 0
    %53 = vmatprep.subr.mxu0 0.0
    %54 = vmatpush1.msra.mxu0 %v42
    %55 = vmatprep.subr.mxu0 0.0
    %56 = vmatpush1.msra.mxu0 %v43
    %57 = vmatprep.subr.mxu0 0.0
    %58 = vmatpush1.msra.mxu0 %v44
    %59 = vmatprep.subr.mxu0 0.0
    %60 = vmatpush1.msra.mxu0 %v45
    %61 = vmatprep.subr.mxu0 0.0
    %62 = vmatpush1.msra.mxu0 0.0
    %63 = vmatprep.subr.mxu0 0.0
    %64 = vmatpush1.msra.mxu0 0.0
    %65 = vmatprep.subr.mxu0 0.0
    %66 = vmatpush1.msra.mxu0 0.0
    %67 = vmatprep.subr.mxu0 0.0
    %68 = vmatpush1.msra.mxu0 0.0
    %69 = vmatprep.subr.mxu0 0.0
    %70 = vmatpush1.msra.mxu0 0.0
    %71 = vmatprep.subr.mxu0 0.0
    %72 = vmatpush1.msra.mxu0 0.0
    %73 = vmatprep.subr.mxu0 0.0
    %74 = vmatpush1.msra.mxu0 0.0
    %75 = vmatprep.subr.mxu0 0.0
    %76 = vmatpush1.msra.mxu0 0.0
    %77 = vmatprep.subr.mxu0 0.0
    %78 = vmatpush1.msra.mxu0 0.0
    %79 = vmatprep.subr.mxu0 0.0
    %80 = vmatpush1.msra.mxu0 0.0
    %81 = vmatprep.subr.mxu0 0.0
    %82 = vmatpush1.msra.mxu0 0.0
    %83 = vmatprep.subr.mxu0 0.0
    %84 = vmatpush1.msra.mxu0 0.0
    %85 = vmatprep.subr.mxu0 0.0
    %86 = vmatpush1.msra.mxu0 0.0
    %87 = vmatprep.subr.mxu0 0.0
    %88 = vmatpush1.msra.mxu0 0.0
    %89 = vmatprep.subr.mxu0 0.0
    %90 = vmatpush1.msra.mxu0 0.0
    %91 = vmatprep.subr.mxu0 0.0
    %92 = vmatpush1.msra.mxu0 0.0
    %93 = vmatprep.subr.mxu0 0.0
    %94 = vmatpush1.msra.mxu0 0.0
    %95 = vmatprep.subr.mxu0 0.0
    %96 = vmatpush1.msra.mxu0 0.0
    %97 = vmatprep.subr.mxu0 0.0
    %98 = vmatpush1.msra.mxu0 0.0
    %99 = vmatprep.subr.mxu0 0.0
    %100 = vmatpush1.msra.mxu0 0.0
    %101 = vmatprep.subr.mxu0 0.0
    %102 = vmatpush1.msra.mxu0 0.0
    %103 = vmatprep.subr.mxu0 0.0
    %104 = vmatpush1.msra.mxu0 0.0
    %105 = vmatprep.subr.mxu0 0.0
    %106 = vmatpush1.msra.mxu0 0.0
    %107 = vmatprep.subr.mxu0 0.0
    %108 = vmatpush1.msra.mxu0 0.0
    %109 = vmatprep.subr.mxu0 0.0
    %110 = vmatpush1.msra.mxu0 0.0
    %111 = vmatprep.subr.mxu0 0.0
    %112 = vmatpush1.msra.mxu0 0.0
    %113 = vmatprep.subr.mxu0 0.0
    %114 = vmatpush1.msra.mxu0 0.0
    %115 = vmatprep.subr.mxu0 0.0
    %116 = vmatpush1.msra.mxu0 0.0
    %117 = vmatprep.mubr.f32.mxu0 0.0
    %118 = vmatmul.mubr.f32.gmra.mrb[0].mxu0 %v48
    %v119 = vpop.f32.mrb[0].mxu0
    %v120 = vadd.f32 0.0, %v119
    %v121 = vpop.f32.mrb[0].mxu0
    %122 = vmatprep.mubr.f32.mxu0 0.0
    %123 = vmatmul.mubr.f32.gmra.mrb[0].mxu0 %v51
    %v124 = vpop.f32.mrb[0].mxu0
    %v125 = vadd.f32 0.0, %v124
    %v126 = vpop.f32.mrb[0].mxu0
    %127 = vdwg.mxu0
    %129 = vrot.lane.b32.xlu0 %v120, 112
    %v130 = vpop.permute.xlu0 %129
    %vm131 = vcmask 130048
    %v132 = vsel %vm131, %v130, 0
    %v134 = vsel %vm131, %v120, 0
    %136 = vmatprep.subr.mxu0 0.0
    %137 = vmatpush1.xpose.msra.mxu0 %v134
    %138 = vmatprep.subr.mxu0 0.0
    %139 = vmatpush1.xpose.msra.mxu0 0.0
    %140 = vmatprep.subr.mxu0 0.0
    %141 = vmatpush1.xpose.msra.mxu0 0.0
    %142 = vmatprep.subr.mxu0 0.0
    %143 = vmatpush1.xpose.msra.mxu0 0.0
    %144 = vmatprep.subr.mxu0 0.0
    %145 = vmatpush1.xpose.msra.mxu0 0.0
    %146 = vmatprep.subr.mxu0 0.0
    %147 = vmatpush1.xpose.msra.mxu0 0.0
    %148 = vmatprep.subr.mxu0 0.0
    %149 = vmatpush1.xpose.msra.mxu0 0.0
    %150 = vmatprep.subr.mxu0 0.0
    %151 = vmatpush1.xpose.msra.mxu0 0.0
    %152 = vmatprep.subr.mxu0 0.0
    %153 = vmatpush1.xpose.msra.mxu0 0.0
    %154 = vmatprep.subr.mxu0 0.0
    %155 = vmatpush1.xpose.msra.mxu0 0.0
    %156 = vmatprep.subr.mxu0 0.0
    %157 = vmatpush1.xpose.msra.mxu0 0.0
    %158 = vmatprep.subr.mxu0 0.0
    %159 = vmatpush1.xpose.msra.mxu0 0.0
    %160 = vmatprep.subr.mxu0 0.0
    %161 = vmatpush1.xpose.msra.mxu0 0.0
    %162 = vmatprep.subr.mxu0 0.0
    %163 = vmatpush1.xpose.msra.mxu0 0.0
    %164 = vmatprep.subr.mxu0 0.0
    %165 = vmatpush1.xpose.msra.mxu0 0.0
    %166 = vmatprep.subr.mxu0 0.0
    %167 = vmatpush1.xpose.msra.mxu0 0.0
    %168 = vmatprep.subr.mxu0 0.0
    %169 = vmatpush1.xpose.msra.mxu0 0.0
    %170 = vmatprep.subr.mxu0 0.0
    %171 = vmatpush1.xpose.msra.mxu0 0.0
    %172 = vmatprep.subr.mxu0 0.0
    %173 = vmatpush1.xpose.msra.mxu0 0.0
    %174 = vmatprep.subr.mxu0 0.0
    %175 = vmatpush1.xpose.msra.mxu0 0.0
    %176 = vmatprep.subr.mxu0 0.0
    %177 = vmatpush1.xpose.msra.mxu0 0.0
    %178 = vmatprep.subr.mxu0 0.0
    %179 = vmatpush1.xpose.msra.mxu0 0.0
    %180 = vmatprep.subr.mxu0 0.0
    %181 = vmatpush1.xpose.msra.mxu0 0.0
    %182 = vmatprep.subr.mxu0 0.0
    %183 = vmatpush1.xpose.msra.mxu0 0.0
    %184 = vmatprep.subr.mxu0 0.0
    %185 = vmatpush1.xpose.msra.mxu0 0.0
    %186 = vmatprep.subr.mxu0 0.0
    %187 = vmatpush1.xpose.msra.mxu0 0.0
    %188 = vmatprep.subr.mxu0 0.0
    %189 = vmatpush1.xpose.msra.mxu0 0.0
    %190 = vmatprep.subr.mxu0 0.0
    %191 = vmatpush1.xpose.msra.mxu0 0.0
    %192 = vmatprep.subr.mxu0 0.0
    %193 = vmatpush1.xpose.msra.mxu0 0.0
    %194 = vmatprep.subr.mxu0 0.0
    %195 = vmatpush1.xpose.msra.mxu0 0.0
    %196 = vmatprep.subr.mxu0 0.0
    %197 = vmatpush1.xpose.msra.mxu0 0.0
    %198 = vmatprep.subr.mxu0 0.0
    %199 = vmatpush1.xpose.msra.mxu0 0.0
    %200 = vmatprep.mubr.f32.mxu0 0.0
    %201 = vmatmul.mubr.f32.gmra.mrb[0].mxu0 %v132
    %v202 = vpop.f32.mrb[0].mxu0
    %v203 = vadd.f32 0.0, %v202
    %v204 = vpop.f32.mrb[0].mxu0
    %205 = vdwg.mxu0
    %207 = vrot.lane.b32.xlu0 %v125, 112
    %v208 = vpop.permute.xlu0 %207
    %v209 = vsel %vm131, %v208, 0
    %v211 = vsel %vm131, %v125, 0
    %213 = vmatprep.subr.mxu0 0.0
    %214 = vmatpush1.xpose.msra.mxu0 %v211
    %215 = vmatprep.subr.mxu0 0.0
    %216 = vmatpush1.xpose.msra.mxu0 0.0
    %217 = vmatprep.subr.mxu0 0.0
    %218 = vmatpush1.xpose.msra.mxu0 0.0
    %219 = vmatprep.subr.mxu0 0.0
    %220 = vmatpush1.xpose.msra.mxu0 0.0
    %221 = vmatprep.subr.mxu0 0.0
    %222 = vmatpush1.xpose.msra.mxu0 0.0
    %223 = vmatprep.subr.mxu0 0.0
    %224 = vmatpush1.xpose.msra.mxu0 0.0
    %225 = vmatprep.subr.mxu0 0.0
    %226 = vmatpush1.xpose.msra.mxu0 0.0
    %227 = vmatprep.subr.mxu0 0.0
    %228 = vmatpush1.xpose.msra.mxu0 0.0
    %229 = vmatprep.subr.mxu0 0.0
    %230 = vmatpush1.xpose.msra.mxu0 0.0
    %231 = vmatprep.subr.mxu0 0.0
    %232 = vmatpush1.xpose.msra.mxu0 0.0
    %233 = vmatprep.subr.mxu0 0.0
    %234 = vmatpush1.xpose.msra.mxu0 0.0
    %235 = vmatprep.subr.mxu0 0.0
    %236 = vmatpush1.xpose.msra.mxu0 0.0
    %237 = vmatprep.subr.mxu0 0.0
    %238 = vmatpush1.xpose.msra.mxu0 0.0
    %239 = vmatprep.subr.mxu0 0.0
    %240 = vmatpush1.xpose.msra.mxu0 0.0
    %241 = vmatprep.subr.mxu0 0.0
    %242 = vmatpush1.xpose.msra.mxu0 0.0
    %243 = vmatprep.subr.mxu0 0.0
    %244 = vmatpush1.xpose.msra.mxu0 0.0
    %245 = vmatprep.subr.mxu0 0.0
    %246 = vmatpush1.xpose.msra.mxu0 0.0
    %247 = vmatprep.subr.mxu0 0.0
    %248 = vmatpush1.xpose.msra.mxu0 0.0
    %249 = vmatprep.subr.mxu0 0.0
    %250 = vmatpush1.xpose.msra.mxu0 0.0
    %251 = vmatprep.subr.mxu0 0.0
    %252 = vmatpush1.xpose.msra.mxu0 0.0
    %253 = vmatprep.subr.mxu0 0.0
    %254 = vmatpush1.xpose.msra.mxu0 0.0
    %255 = vmatprep.subr.mxu0 0.0
    %256 = vmatpush1.xpose.msra.mxu0 0.0
    %257 = vmatprep.subr.mxu0 0.0
    %258 = vmatpush1.xpose.msra.mxu0 0.0
    %259 = vmatprep.subr.mxu0 0.0
    %260 = vmatpush1.xpose.msra.mxu0 0.0
    %261 = vmatprep.subr.mxu0 0.0
    %262 = vmatpush1.xpose.msra.mxu0 0.0
    %263 = vmatprep.subr.mxu0 0.0
    %264 = vmatpush1.xpose.msra.mxu0 0.0
    %265 = vmatprep.subr.mxu0 0.0
    %266 = vmatpush1.xpose.msra.mxu0 0.0
    %267 = vmatprep.subr.mxu0 0.0
    %268 = vmatpush1.xpose.msra.mxu0 0.0
    %269 = vmatprep.subr.mxu0 0.0
    %270 = vmatpush1.xpose.msra.mxu0 0.0
    %271 = vmatprep.subr.mxu0 0.0
    %272 = vmatpush1.xpose.msra.mxu0 0.0
    %273 = vmatprep.subr.mxu0 0.0
    %274 = vmatpush1.xpose.msra.mxu0 0.0
    %275 = vmatprep.subr.mxu0 0.0
    %276 = vmatpush1.xpose.msra.mxu0 0.0
    %277 = vmatprep.mubr.f32.mxu0 0.0
    %278 = vmatmul.mubr.f32.gmra.mrb[0].mxu0 %v209
    %v279 = vpop.f32.mrb[0].mxu0
    %v280 = vadd.f32 0.0, %v279
    %v281 = vpop.f32.mrb[0].mxu0
    %282 = vdwg.mxu0
    %v283 = vlaneseq
    %v284 = vshrl.u32 %v283, 7
    %v285 = vlaneseq
    %v286 = vand.u32 %v285, 127
    %vm287 = vcmp.le.s32.totalorder %v286, %v284
    %v288 = vsel %vm287, 1, 0
    %vm289 = vcmp.eq.s32.totalorder %v288, 1
    %v290 = vsel %vm289, %v203, -1e+30
    %v291 = vsel %vm289, %v280, -1e+30
    %vm292 = vcmask 64512
    %v293 = vsel %vm292, %v290, -inf
    %294 = vmax.xlane.f32.xlu0 %v293
    %v295 = vpop.xlane.xlu0 %294
    %v296 = vsel %vm292, %v291, -inf
    %297 = vmax.xlane.f32.xlu0 %v296
    %v298 = vpop.xlane.xlu0 %297
    %v299 = vsub.f32 %v290, %v295
    %v300 = vsub.f32 %v291, %v298
    %v301 = vmul.f32 %v299, 1.442695
    %v302 = vpow.pop %v301
    %v303 = vmul.f32 %v300, 1.442695
    %v304 = vpow.pop %v303
    %v305 = vsel %vm292, %v302, 0.0
    %306 = vadd.xlane.f32.xlu0 %v305
    %v307 = vpop.xlane.xlu0 %306
    %v308 = vsel %vm292, %v304, 0.0
    %309 = vadd.xlane.f32.xlu0 %v308
    %v310 = vpop.xlane.xlu0 %309
    %v311 = vrcp.pop %v307
    %v312 = vrcp.pop %v310
    %v313 = vmul.f32 %v302, %v311
    %v314 = vmul.f32 %v304, %v312
    %315 = vrot.lane.b32.xlu0 %v120, 96
    %v316 = vpop.permute.xlu0 %315
    %v319 = vsel %vm292, %v313, 0
    %321 = vmatprep.subr.mxu0 0.0
    %322 = vmatpush1.msra.mxu0 %v316
    %323 = vmatprep.subr.mxu0 0.0
    %324 = vmatpush1.msra.mxu0 0.0
    %325 = vmatprep.subr.mxu0 0.0
    %326 = vmatpush1.msra.mxu0 0.0
    %327 = vmatprep.subr.mxu0 0.0
    %328 = vmatpush1.msra.mxu0 0.0
    %329 = vmatprep.subr.mxu0 0.0
    %330 = vmatpush1.msra.mxu0 0.0
    %331 = vmatprep.subr.mxu0 0.0
    %332 = vmatpush1.msra.mxu0 0.0
    %333 = vmatprep.subr.mxu0 0.0
    %334 = vmatpush1.msra.mxu0 0.0
    %335 = vmatprep.subr.mxu0 0.0
    %336 = vmatpush1.msra.mxu0 0.0
    %337 = vmatprep.subr.mxu0 0.0
    %338 = vmatpush1.msra.mxu0 0.0
    %339 = vmatprep.subr.mxu0 0.0
    %340 = vmatpush1.msra.mxu0 0.0
    %341 = vmatprep.subr.mxu0 0.0
    %342 = vmatpush1.msra.mxu0 0.0
    %343 = vmatprep.subr.mxu0 0.0
    %344 = vmatpush1.msra.mxu0 0.0
    %345 = vmatprep.subr.mxu0 0.0
    %346 = vmatpush1.msra.mxu0 0.0
    %347 = vmatprep.subr.mxu0 0.0
    %348 = vmatpush1.msra.mxu0 0.0
    %349 = vmatprep.subr.mxu0 0.0
    %350 = vmatpush1.msra.mxu0 0.0
    %351 = vmatprep.subr.mxu0 0.0
    %352 = vmatpush1.msra.mxu0 0.0
    %353 = vmatprep.subr.mxu0 0.0
    %354 = vmatpush1.msra.mxu0 0.0
    %355 = vmatprep.subr.mxu0 0.0
    %356 = vmatpush1.msra.mxu0 0.0
    %357 = vmatprep.subr.mxu0 0.0
    %358 = vmatpush1.msra.mxu0 0.0
    %359 = vmatprep.subr.mxu0 0.0
    %360 = vmatpush1.msra.mxu0 0.0
    %361 = vmatprep.subr.mxu0 0.0
    %362 = vmatpush1.msra.mxu0 0.0
    %363 = vmatprep.subr.mxu0 0.0
    %364 = vmatpush1.msra.mxu0 0.0
    %365 = vmatprep.subr.mxu0 0.0
    %366 = vmatpush1.msra.mxu0 0.0
    %367 = vmatprep.subr.mxu0 0.0
    %368 = vmatpush1.msra.mxu0 0.0
    %369 = vmatprep.subr.mxu0 0.0
    %370 = vmatpush1.msra.mxu0 0.0
    %371 = vmatprep.subr.mxu0 0.0
    %372 = vmatpush1.msra.mxu0 0.0
    %373 = vmatprep.subr.mxu0 0.0
    %374 = vmatpush1.msra.mxu0 0.0
    %375 = vmatprep.subr.mxu0 0.0
    %376 = vmatpush1.msra.mxu0 0.0
    %377 = vmatprep.subr.mxu0 0.0
    %378 = vmatpush1.msra.mxu0 0.0
    %379 = vmatprep.subr.mxu0 0.0
    %380 = vmatpush1.msra.mxu0 0.0
    %381 = vmatprep.subr.mxu0 0.0
    %382 = vmatpush1.msra.mxu0 0.0
    %383 = vmatprep.subr.mxu0 0.0
    %384 = vmatpush1.msra.mxu0 0.0
    %385 = vmatprep.mubr.f32.mxu0 0.0
    %386 = vmatmul.mubr.f32.gmra.mrb[0].mxu0 %v319
    %v387 = vpop.f32.mrb[0].mxu0
    %v388 = vadd.f32 0.0, %v387
    %v389 = vpop.f32.mrb[0].mxu0
    %390 = vdwg.mxu0
    %391 = vrot.lane.b32.xlu0 %v125, 96
    %v392 = vpop.permute.xlu0 %391
    %v395 = vsel %vm292, %v314, 0
    %397 = vmatprep.subr.mxu0 0.0
    %398 = vmatpush1.msra.mxu0 %v392
    %399 = vmatprep.subr.mxu0 0.0
    %400 = vmatpush1.msra.mxu0 0.0
    %401 = vmatprep.subr.mxu0 0.0
    %402 = vmatpush1.msra.mxu0 0.0
    %403 = vmatprep.subr.mxu0 0.0
    %404 = vmatpush1.msra.mxu0 0.0
    %405 = vmatprep.subr.mxu0 0.0
    %406 = vmatpush1.msra.mxu0 0.0
    %407 = vmatprep.subr.mxu0 0.0
    %408 = vmatpush1.msra.mxu0 0.0
    %409 = vmatprep.subr.mxu0 0.0
    %410 = vmatpush1.msra.mxu0 0.0
    %411 = vmatprep.subr.mxu0 0.0
    %412 = vmatpush1.msra.mxu0 0.0
    %413 = vmatprep.subr.mxu0 0.0
    %414 = vmatpush1.msra.mxu0 0.0
    %415 = vmatprep.subr.mxu0 0.0
    %416 = vmatpush1.msra.mxu0 0.0
    %417 = vmatprep.subr.mxu0 0.0
    %418 = vmatpush1.msra.mxu0 0.0
    %419 = vmatprep.subr.mxu0 0.0
    %420 = vmatpush1.msra.mxu0 0.0
    %421 = vmatprep.subr.mxu0 0.0
    %422 = vmatpush1.msra.mxu0 0.0
    %423 = vmatprep.subr.mxu0 0.0
    %424 = vmatpush1.msra.mxu0 0.0
    %425 = vmatprep.subr.mxu0 0.0
    %426 = vmatpush1.msra.mxu0 0.0
    %427 = vmatprep.subr.mxu0 0.0
    %428 = vmatpush1.msra.mxu0 0.0
    %429 = vmatprep.subr.mxu0 0.0
    %430 = vmatpush1.msra.mxu0 0.0
    %431 = vmatprep.subr.mxu0 0.0
    %432 = vmatpush1.msra.mxu0 0.0
    %433 = vmatprep.subr.mxu0 0.0
    %434 = vmatpush1.msra.mxu0 0.0
    %435 = vmatprep.subr.mxu0 0.0
    %436 = vmatpush1.msra.mxu0 0.0
    %437 = vmatprep.subr.mxu0 0.0
    %438 = vmatpush1.msra.mxu0 0.0
    %439 = vmatprep.subr.mxu0 0.0
    %440 = vmatpush1.msra.mxu0 0.0
    %441 = vmatprep.subr.mxu0 0.0
    %442 = vmatpush1.msra.mxu0 0.0
    %443 = vmatprep.subr.mxu0 0.0
    %444 = vmatpush1.msra.mxu0 0.0
    %445 = vmatprep.subr.mxu0 0.0
    %446 = vmatpush1.msra.mxu0 0.0
    %447 = vmatprep.subr.mxu0 0.0
    %448 = vmatpush1.msra.mxu0 0.0
    %449 = vmatprep.subr.mxu0 0.0
    %450 = vmatpush1.msra.mxu0 0.0
    %451 = vmatprep.subr.mxu0 0.0
    %452 = vmatpush1.msra.mxu0 0.0
    %453 = vmatprep.subr.mxu0 0.0
    %454 = vmatpush1.msra.mxu0 0.0
    %455 = vmatprep.subr.mxu0 0.0
    %456 = vmatpush1.msra.mxu0 0.0
    %457 = vmatprep.subr.mxu0 0.0
    %458 = vmatpush1.msra.mxu0 0.0
    %459 = vmatprep.subr.mxu0 0.0
    %460 = vmatpush1.msra.mxu0 0.0
    %461 = vmatprep.mubr.f32.mxu0 0.0
    %462 = vmatmul.mubr.f32.gmra.mrb[0].mxu0 %v395
    %v463 = vpop.f32.mrb[0].mxu0
    %v464 = vadd.f32 0.0, %v463
    %v465 = vpop.f32.mrb[0].mxu0
    %466 = vdwg.mxu0
    %v469 = vrot.slane %v464, 7
    %vm470 = vcmask 1041409
    %v471 = vsel %vm470, %v469, %v388
    %vm473 = vcmask 123904
    %474 = vst.msk [vmem:[#allocation7] sm:$0x3] %vm473, %v471
    %vm475 = vcmask 1042434
    %v476 = vsel %vm475, %v469, %v388
    %477 = vrot.lane.b32.xlu0 %v476, 16
    %v478 = vpop.permute.xlu0 %477
    %vm480 = vcmask 256129
    %481 = vst.msk [vmem:[#allocation7 - $0x1] sm:$0x6] %vm480, %v478
    %vm482 = vcmask 1043459
    %v483 = vsel %vm482, %v469, %v388
    %484 = vrot.lane.b32.xlu0 %v483, 32
    %v485 = vpop.permute.xlu0 %484
    %vm487 = vcmask 388354
    %488 = vst.msk [vmem:[#allocation7 - $0x2] sm:$0xc] %vm487, %v485
    %vm489 = vcmask 1044484
    %v490 = vsel %vm489, %v469, %v388
    %491 = vrot.lane.b32.xlu0 %v490, 48
    %v492 = vpop.permute.xlu0 %491
    %vm494 = vcmask 520579
    %495 = vst.msk [vmem:[#allocation7 - $0x3] sm:$0x18] %vm494, %v492
    %vm496 = vcmask 1045509
    %v497 = vsel %vm496, %v469, %v388
    %498 = vrot.lane.b32.xlu0 %v497, 64
    %v499 = vpop.permute.xlu0 %498
    %vm501 = vcmask 652804
    %502 = vst.msk [vmem:[#allocation7 - $0x4] sm:$0x30] %vm501, %v499
    %vm503 = vcmask 1046534
    %v504 = vsel %vm503, %v469, %v388
    %505 = vrot.lane.b32.xlu0 %v504, 80
    %v506 = vpop.permute.xlu0 %505
    %vm508 = vcmask 785029
    %509 = vst.msk [vmem:[#allocation7 - $0x5] sm:$0x60] %vm508, %v506
    %vm510 = vcmask 1047559
    %v511 = vsel %vm510, %v469, %v388
    %512 = vrot.lane.b32.xlu0 %v511, 96
    %v513 = vpop.permute.xlu0 %512
    %vm515 = vcmask 917254
    %516 = vst.msk [vmem:[#allocation7 - $0x6] sm:$0xc0] %vm515, %v513
    %517 = vrot.lane.b32.xlu0 %v388, 112
    %v518 = vpop.permute.xlu0 %517
    %519 = vrot.lane.b32.xlu0 %v469, 112
    %v520 = vpop.permute.xlu0 %519
    %vm523 = vcmask 1048455
    %524 = vst.msk [vmem:[#allocation7 - $0x7] sm:$0x80] %vm523, %v518
    %vm525 = vcmask 1041280
    %526 = vst.msk [vmem:[#allocation7 + $0x1] sm:$0x1] %vm525, %v520
    // Predicated region
    $region18: #{tpu_custom_call.1} parent=1 // pred_check
      _
    $region19: #{tpu_custom_call.1} parent=1 // pred_check_branch
      %528 = sbr.rel (0) target = $region21
    $region20: #{tpu_custom_call.1} parent=1 // pred_region
      %s530 = ssub.s32 32, 32
      %531 = vsyncadd [#allocation4], %s530
      %s533 = sshll.u32 [#allocation7], 4
      %s534 = int_to_ptr.vmem [resolvable:$true] %s533
      %536 = dma.vmem_to_hbm [thread:$0]  %s534, 32, %s2, [#allocation4]
    $region21: #{tpu_custom_call.1} parent=1 // pred_fallthru
      _
    // Predicated region
    $region22: #{tpu_custom_call.1} parent=1 // pred_check
      _
    $region23: #{tpu_custom_call.1} parent=1 // pred_check_branch
      %538 = sbr.rel (0) target = $region25
    $region24: #{tpu_custom_call.1} parent=1 // pred_region
      %539 = dma.done [#allocation4], 32
    $region25: #{tpu_custom_call.1} parent=1 // pred_fallthru
      _
    %540 = vsyncpa [#allocation3], 1
    %541 = vsyncpa [#allocation6], 1
    %542 = vsyncpa [#allocation4], 1

</llo_original>
